<compile_context>
chip_gen: v7x
topology: tpu7x:2x2x1
jax: 0.10.0
libtpu: 0.0.40
codegen_flags: <defaults>
</compile_context>

<pallas_src>
import jax
import jax.numpy as jnp
from jax.experimental import pallas as pl
from jax.experimental.pallas import tpu as pltpu

CAM_HEIGHT = 8
CAM_WIDTH = 8
CHANNELS = 3
INPUT_SIZE = CAM_HEIGHT * CAM_WIDTH * CHANNELS   # 192
H1, H2, H3 = 64, 128, 64
ACTION_SIZE = 8

# Zero-padded hidden widths (lane/MXU friendly; padding is exact).
H1_P, H3_P = 128, 128


def _round_up(n, m):
    return (n + m - 1) // m * m


def _cdiv(a, b):
    return (a + b - 1) // b


def dqn_kernel(x_ref, w1_ref, b1_ref, w2_ref, w3_ref, b3_ref, w4_ref, out_ref):
    # In-kernel cast: x arrives as f32 (single HBM pass), bf16 on the MXU.
    x = x_ref[...].astype(jnp.bfloat16)
    # fc1 + ReLU. b1's padded lane 64 is 1.0, so h[:, 64] == 1 for every row
    # (w1 column 64 is zero); that lane feeds the folded fc2 bias below.
    h = jnp.dot(x, w1_ref[...], preferred_element_type=jnp.float32)
    h = jnp.maximum(h + b1_ref[...], 0.0)
    # fc2 + ReLU (bias already folded into w2 row 64 -> no VPU bias add).
    h = jnp.dot(h.astype(jnp.bfloat16), w2_ref[...],
                preferred_element_type=jnp.float32)
    h = jnp.maximum(h, 0.0)
    # fc3 + ReLU. b3's padded lane 64 is 1.0 -> feeds the folded fc4 bias.
    h = jnp.dot(h.astype(jnp.bfloat16), w3_ref[...],
                preferred_element_type=jnp.float32)
    h = jnp.maximum(h + b3_ref[...], 0.0)
    # fc4 (bias folded into w4 row 64; no activation).
    o = jnp.dot(h.astype(jnp.bfloat16), w4_ref[...],
                preferred_element_type=jnp.float32)
    out_ref[...] = o.astype(out_ref.dtype)


def prep_params(params):
    """One-time parameter prep: pad 64-wide dims to 128, cast to bf16, and fold
    fc2/fc4 biases into the padded weight rows via a ones-lane in b1/b3.

    Call once per parameter update and reuse the returned tuple across forward
    calls (keeps the per-call path free of pad/cast XLA kernels).
    """
    w1 = jnp.pad(params["w1"], ((0, 0), (0, H1_P - H1)))       # (192,128), cols 64.. == 0
    b1 = jnp.pad(params["b1"], ((0, 0), (0, H1_P - H1)))
    b1 = b1.at[0, H1].set(1.0)                                  # ones lane -> folded b2
    w2 = jnp.pad(params["w2"], ((0, H1_P - H1), (0, 0)))        # (128,128)
    w2 = w2.at[H1, :].set(params["b2"][0])                      # row 64 := b2
    w3 = jnp.pad(params["w3"], ((0, 0), (0, H3_P - H3)))        # (128,128), cols 64.. == 0
    b3 = jnp.pad(params["b3"], ((0, 0), (0, H3_P - H3)))
    b3 = b3.at[0, H3].set(1.0)                                  # ones lane -> folded b4
    w4 = jnp.pad(params["w4"], ((0, H3_P - H3), (0, 0)))        # (128,8)
    w4 = w4.at[H3, :].set(params["b4"][0])                      # row 64 := b4
    return (w1.astype(jnp.bfloat16), b1.astype(jnp.float32),
            w2.astype(jnp.bfloat16),
            w3.astype(jnp.bfloat16), b3.astype(jnp.float32),
            w4.astype(jnp.bfloat16))


def _choose_tb(B, tb_max):
    if B <= 128:
        # Single grid step; multiple of 16 (bf16 out sublane tile).
        return max(16, _round_up(B, 16))
    # >= 2 grid steps (v7x megacore); multiple of 128 keeps every block tiled.
    return min(_round_up(tb_max, 128), _round_up(_cdiv(B, 2), 128))


def dqn_forward(x, prepped, *, tb=2048):
    """x: (B, INPUT_SIZE) float32 (or bf16). prepped: output of prep_params."""
    B = x.shape[0]
    TB = _choose_tb(B, tb)
    grid = _cdiv(B, TB)         # ragged tail handled by Pallas boundary blocks

    def _const(i):
        return (0, 0)

    x_spec = pl.BlockSpec((TB, INPUT_SIZE), lambda i: (i, 0))
    w_specs = [pl.BlockSpec(tuple(a.shape), _const) for a in prepped]
    out_spec = pl.BlockSpec((TB, ACTION_SIZE), lambda i: (i, 0))

    flops = 2 * B * (INPUT_SIZE * H1_P + H1_P * H2 + H2 * H3_P
                     + H3_P * ACTION_SIZE)
    bytes_accessed = (int(x.size) * x.dtype.itemsize
                      + sum(int(a.size) * a.dtype.itemsize for a in prepped)
                      + B * ACTION_SIZE * 2)

    out = pl.pallas_call(
        dqn_kernel,
        out_shape=jax.ShapeDtypeStruct((B, ACTION_SIZE), jnp.bfloat16),
        grid=(grid,),
        in_specs=[x_spec] + w_specs,
        out_specs=out_spec,
        compiler_params=pltpu.CompilerParams(
            dimension_semantics=("parallel",),
            vmem_limit_bytes=32 * 1024 * 1024),
        cost_estimate=pl.CostEstimate(
            flops=flops, transcendentals=0, bytes_accessed=bytes_accessed),
    )(x, *prepped)
    # Tiny (B, 8) cast back to f32 to match the PyTorch interface.
    return out.astype(jnp.float32)


def init_params(key):
    """Deterministic init matching nn.Linear shapes (kaiming-uniform-ish)."""
    def linear(key, fan_in, fan_out):
        kw, kb = jax.random.split(key)
        bound = 1.0 / jnp.sqrt(fan_in)
        w = jax.random.uniform(kw, (fan_in, fan_out), jnp.float32, -bound, bound)
        b = jax.random.uniform(kb, (1, fan_out), jnp.float32, -bound, bound)
        return w, b

    k1, k2, k3, k4 = jax.random.split(key, 4)
    w1, b1 = linear(k1, INPUT_SIZE, H1)
    w2, b2 = linear(k2, H1, H2)
    w3, b3 = linear(k3, H2, H3)
    w4, b4 = linear(k4, H3, ACTION_SIZE)
    return {"w1": w1, "b1": b1, "w2": w2, "b2": b2,
            "w3": w3, "b3": b3, "w4": w4, "b4": b4}


def dqn_reference(x, p):
    h = jnp.maximum(x @ p["w1"] + p["b1"], 0.0)
    h = jnp.maximum(h @ p["w2"] + p["b2"], 0.0)
    h = jnp.maximum(h @ p["w3"] + p["b3"], 0.0)
    return h @ p["w4"] + p["b4"]


if __name__ == "__main__":
    key = jax.random.PRNGKey(0)
    kx, kp, kx2 = jax.random.split(key, 3)
    params = init_params(kp)
    prepped = prep_params(params)    # hoisted: done once, reused per call

    # Small test (B=2): single grid step, partial boundary block.
    B = 2
    x = jax.random.normal(kx, (B, INPUT_SIZE), jnp.float32)
    out = jax.block_until_ready(dqn_forward(x, prepped))
    ref = dqn_reference(x, params)
    assert out.shape == (B, ACTION_SIZE)
    # bf16 dot inputs / bf16 output -> relaxed tolerance vs the f32 reference.
    assert jnp.allclose(out, ref, atol=3e-2, rtol=3e-2)

    # Multi-grid-step test (B=200 -> TB=128, grid=2, ragged last block).
    B2 = 200
    x2 = jax.random.normal(kx2, (B2, INPUT_SIZE), jnp.float32)
    out2 = jax.block_until_ready(dqn_forward(x2, prepped))
    ref2 = dqn_reference(x2, params)
    assert out2.shape == (B2, ACTION_SIZE)
    assert jnp.allclose(out2, ref2, atol=3e-2, rtol=3e-2)

    print("KERNEL_OK")
</pallas_src>

<mosaic_0001>
module attributes {stable_mosaic.version = 11 : i64} {
  func.func @dqn_kernel(%arg0: i32, %arg1: memref<16x192xf32, #tpu.memory_space<vmem>>, %arg2: memref<192x128xbf16, #tpu.memory_space<vmem>>, %arg3: memref<1x128xf32, #tpu.memory_space<vmem>>, %arg4: memref<128x128xbf16, #tpu.memory_space<vmem>>, %arg5: memref<128x128xbf16, #tpu.memory_space<vmem>>, %arg6: memref<1x128xf32, #tpu.memory_space<vmem>>, %arg7: memref<128x8xbf16, #tpu.memory_space<vmem>>, %arg8: memref<16x8xbf16, #tpu.memory_space<vmem>>) attributes {dimension_semantics = [#tpu.dimension_semantics<parallel>], iteration_bounds = array<i64: 1>, scalar_prefetch = 0 : i64, scratch_operands = 0 : i64, tpu.core_type = #tpu.core_type<tc>, window_params = [{transform_indices = @transform_0, window_bounds = array<i64: 16, 192>}, {pipeline_mode = #tpu.pipeline_mode<synchronous>, transform_indices = @transform_1, window_bounds = array<i64: 192, 128>}, {pipeline_mode = #tpu.pipeline_mode<synchronous>, transform_indices = @transform_2, window_bounds = array<i64: 1, 128>}, {pipeline_mode = #tpu.pipeline_mode<synchronous>, transform_indices = @transform_3, window_bounds = array<i64: 128, 128>}, {pipeline_mode = #tpu.pipeline_mode<synchronous>, transform_indices = @transform_4, window_bounds = array<i64: 128, 128>}, {pipeline_mode = #tpu.pipeline_mode<synchronous>, transform_indices = @transform_5, window_bounds = array<i64: 1, 128>}, {pipeline_mode = #tpu.pipeline_mode<synchronous>, transform_indices = @transform_6, window_bounds = array<i64: 128, 8>}, {transform_indices = @transform_7, window_bounds = array<i64: 16, 8>}]} {
    %c0 = arith.constant 0 : index
    %c0_0 = arith.constant 0 : index
    %0 = vector.load %arg1[%c0, %c0_0] : memref<16x192xf32, #tpu.memory_space<vmem>>, vector<16x192xf32>
    %1 = arith.truncf %0 : vector<16x192xf32> to vector<16x192xbf16>
    %c0_1 = arith.constant 0 : index
    %c0_2 = arith.constant 0 : index
    %2 = vector.load %arg2[%c0_1, %c0_2] : memref<192x128xbf16, #tpu.memory_space<vmem>>, vector<192x128xbf16>
    %cst = arith.constant dense<0.000000e+00> : vector<16x128xf32>
    %3 = tpu.matmul %1, %2, %cst {dimension_numbers = #tpu.dot_dimension_numbers<[1], [0], [0], [1], [0, 0, 1, 1], [], []>} : vector<16x192xbf16>, vector<192x128xbf16>, vector<16x128xf32> -> vector<16x128xf32>
    %c0_3 = arith.constant 0 : index
    %c0_4 = arith.constant 0 : index
    %4 = vector.load %arg3[%c0_3, %c0_4] : memref<1x128xf32, #tpu.memory_space<vmem>>, vector<1x128xf32>
    %5 = vector.broadcast %4 : vector<1x128xf32> to vector<16x128xf32>
    %6 = arith.addf %3, %5 : vector<16x128xf32>
    %cst_5 = arith.constant 0.000000e+00 : f32
    %7 = vector.broadcast %cst_5 : f32 to vector<16x128xf32>
    %8 = arith.maximumf %6, %7 : vector<16x128xf32>
    %9 = arith.truncf %8 : vector<16x128xf32> to vector<16x128xbf16>
    %c0_6 = arith.constant 0 : index
    %c0_7 = arith.constant 0 : index
    %10 = vector.load %arg4[%c0_6, %c0_7] : memref<128x128xbf16, #tpu.memory_space<vmem>>, vector<128x128xbf16>
    %cst_8 = arith.constant dense<0.000000e+00> : vector<16x128xf32>
    %11 = tpu.matmul %9, %10, %cst_8 {dimension_numbers = #tpu.dot_dimension_numbers<[1], [0], [0], [1], [0, 0, 1, 1], [], []>} : vector<16x128xbf16>, vector<128x128xbf16>, vector<16x128xf32> -> vector<16x128xf32>
    %cst_9 = arith.constant 0.000000e+00 : f32
    %12 = vector.broadcast %cst_9 : f32 to vector<16x128xf32>
    %13 = arith.maximumf %11, %12 : vector<16x128xf32>
    %14 = arith.truncf %13 : vector<16x128xf32> to vector<16x128xbf16>
    %c0_10 = arith.constant 0 : index
    %c0_11 = arith.constant 0 : index
    %15 = vector.load %arg5[%c0_10, %c0_11] : memref<128x128xbf16, #tpu.memory_space<vmem>>, vector<128x128xbf16>
    %cst_12 = arith.constant dense<0.000000e+00> : vector<16x128xf32>
    %16 = tpu.matmul %14, %15, %cst_12 {dimension_numbers = #tpu.dot_dimension_numbers<[1], [0], [0], [1], [0, 0, 1, 1], [], []>} : vector<16x128xbf16>, vector<128x128xbf16>, vector<16x128xf32> -> vector<16x128xf32>
    %c0_13 = arith.constant 0 : index
    %c0_14 = arith.constant 0 : index
    %17 = vector.load %arg6[%c0_13, %c0_14] : memref<1x128xf32, #tpu.memory_space<vmem>>, vector<1x128xf32>
    %18 = vector.broadcast %17 : vector<1x128xf32> to vector<16x128xf32>
    %19 = arith.addf %16, %18 : vector<16x128xf32>
    %cst_15 = arith.constant 0.000000e+00 : f32
    %20 = vector.broadcast %cst_15 : f32 to vector<16x128xf32>
    %21 = arith.maximumf %19, %20 : vector<16x128xf32>
    %22 = arith.truncf %21 : vector<16x128xf32> to vector<16x128xbf16>
    %c0_16 = arith.constant 0 : index
    %c0_17 = arith.constant 0 : index
    %23 = vector.load %arg7[%c0_16, %c0_17] : memref<128x8xbf16, #tpu.memory_space<vmem>>, vector<128x8xbf16>
    %cst_18 = arith.constant dense<0.000000e+00> : vector<16x8xf32>
    %24 = tpu.matmul %22, %23, %cst_18 {dimension_numbers = #tpu.dot_dimension_numbers<[1], [0], [0], [1], [0, 0, 1, 1], [], []>} : vector<16x128xbf16>, vector<128x8xbf16>, vector<16x8xf32> -> vector<16x8xf32>
    %25 = arith.truncf %24 : vector<16x8xf32> to vector<16x8xbf16>
    %c0_19 = arith.constant 0 : index
    %c0_20 = arith.constant 0 : index
    %26 = vector.load %arg8[%c0_19, %c0_20] : memref<16x8xbf16, #tpu.memory_space<vmem>>, vector<16x8xbf16>
    tpu.vector_store %arg8[%c0_19, %c0_20], %25 {strides = array<i32>} : memref<16x8xbf16, #tpu.memory_space<vmem>>, vector<16x8xbf16>,
    return
  }
  func.func @transform_0(%arg0: i32) -> (i32, i32) {
    %c0_i32 = arith.constant 0 : i32
    %c0_i32_0 = arith.constant 0 : i32
    return %arg0, %c0_i32 : i32, i32
  }
  func.func @transform_1(%arg0: i32) -> (i32, i32) {
    %c0_i32 = arith.constant 0 : i32
    %c0_i32_0 = arith.constant 0 : i32
    %c0_i32_1 = arith.constant 0 : i32
    return %c0_i32, %c0_i32_0 : i32, i32
  }
  func.func @transform_2(%arg0: i32) -> (i32, i32) {
    %c0_i32 = arith.constant 0 : i32
    %c0_i32_0 = arith.constant 0 : i32
    %c0_i32_1 = arith.constant 0 : i32
    return %c0_i32, %c0_i32_0 : i32, i32
  }
  func.func @transform_3(%arg0: i32) -> (i32, i32) {
    %c0_i32 = arith.constant 0 : i32
    %c0_i32_0 = arith.constant 0 : i32
    %c0_i32_1 = arith.constant 0 : i32
    return %c0_i32, %c0_i32_0 : i32, i32
  }
  func.func @transform_4(%arg0: i32) -> (i32, i32) {
    %c0_i32 = arith.constant 0 : i32
    %c0_i32_0 = arith.constant 0 : i32
    %c0_i32_1 = arith.constant 0 : i32
    return %c0_i32, %c0_i32_0 : i32, i32
  }
  func.func @transform_5(%arg0: i32) -> (i32, i32) {
    %c0_i32 = arith.constant 0 : i32
    %c0_i32_0 = arith.constant 0 : i32
    %c0_i32_1 = arith.constant 0 : i32
    return %c0_i32, %c0_i32_0 : i32, i32
  }
  func.func @transform_6(%arg0: i32) -> (i32, i32) {
    %c0_i32 = arith.constant 0 : i32
    %c0_i32_0 = arith.constant 0 : i32
    %c0_i32_1 = arith.constant 0 : i32
    return %c0_i32, %c0_i32_0 : i32, i32
  }
  func.func @transform_7(%arg0: i32) -> (i32, i32) {
    %c0_i32 = arith.constant 0 : i32
    %c0_i32_0 = arith.constant 0 : i32
    return %arg0, %c0_i32 : i32, i32
  }
}

</mosaic_0001>

<llo_original>
// kernel: tpu_custom_call.1
$region0: #{tpu_custom_call.1}
  #allocation0 [shape = 'u32[]', space=smem, size = 0x4, offset = 0x4, fixed_abs, tag = 'smem constant byte address 0x4 - core index']
  #allocation1 [shape = 'u32[144,128]{1,0:T(1,128)}', space=vmem, size = 0x12000, scoped, tag = 'internal scratch']
  %s0 = inlined_call_operand.vmem [shape: f32[2,192], index: 0, kind: input, shape index: {}]
  %s1 = inlined_call_operand.hbm [shape: bf16[192,128], index: 1, kind: input, shape index: {}]
  %s2 = inlined_call_operand.vmem [shape: f32[1,128], index: 2, kind: input, shape index: {}]
  %s3 = inlined_call_operand.vmem [shape: bf16[128,128], index: 3, kind: input, shape index: {}]
  %s4 = inlined_call_operand.hbm [shape: bf16[128,128], index: 4, kind: input, shape index: {}]
  %s5 = inlined_call_operand.vmem [shape: f32[1,128], index: 5, kind: input, shape index: {}]
  %s6 = inlined_call_operand.vmem [shape: bf16[128,8], index: 6, kind: input, shape index: {}]
  %s7 = inlined_call_operand.hbm [shape: bf16[2,8], index: 7, kind: output, shape index: {}]
  %s8 = sld [smem:[#allocation0]]
  $region46: #{tpu_custom_call.1} parent=0
    _
  %s10 = ssub.s32 1, %s8
  %s11 = scalar_select 0, %s10, %s8
  $region1: #{tpu_custom_call.1} parent=0
    #allocation2 [shape = 'u8[49152]{0}', space=vmem, size = 0xc000, scoped, tag = 'input window, operand 1, single buffered']
    #allocation3 [shape = 's32[1]{0}', space=sflag, size = 0x4, scoped, tag = 'scoped memory for tpu_custom_call.1']
    #allocation4 [shape = 's32[1]{0}', space=sflag, size = 0x4, scoped, tag = 'scoped memory for tpu_custom_call.1']
    #allocation5 [shape = 'u8[32768]{0}', space=vmem, size = 0x8000, scoped, tag = 'input window, operand 4, single buffered']
    #allocation6 [shape = 's32[1]{0}', space=sflag, size = 0x4, scoped, tag = 'scoped memory for tpu_custom_call.1']
    #allocation7 [shape = 'u8[4096]{0}', space=vmem, size = 0x1000, scoped, tag = 'output window, operand 0, single buffered']
    %12 = vsyncpa [#allocation3], 0
    %13 = vsyncpa [#allocation6], 0
    %14 = vsyncpa [#allocation4], 0
    // Predicated region
    $region2: #{tpu_custom_call.1} parent=1 // pred_check
      _
    $region3: #{tpu_custom_call.1} parent=1 // pred_check_branch
      %16 = sbr.rel (0) target = $region5
    $region4: #{tpu_custom_call.1} parent=1 // pred_region
      _
    $region5: #{tpu_custom_call.1} parent=1 // pred_fallthru
      _
    // Predicated region
    $region6: #{tpu_custom_call.1} parent=1 // pred_check
      _
    $region7: #{tpu_custom_call.1} parent=1 // pred_check_branch
      %18 = sbr.rel (0) target = $region9
    $region8: #{tpu_custom_call.1} parent=1 // pred_region
      %s20 = ssub.s32 1536, 1536
      %21 = vsyncadd [#allocation3], %s20
      %s22 = sshll.u32 [#allocation2], 4
      %s23 = int_to_ptr.vmem [resolvable:$true] %s22
      %28 = dma.hbm_to_vmem [thread:$0]  %s1, 1536, %s23, [#allocation3], 64, 64, 4
    $region9: #{tpu_custom_call.1} parent=1 // pred_fallthru
      _
    // Predicated region
    $region10: #{tpu_custom_call.1} parent=1 // pred_check
      _
    $region11: #{tpu_custom_call.1} parent=1 // pred_check_branch
      %30 = sbr.rel (0) target = $region13
    $region12: #{tpu_custom_call.1} parent=1 // pred_region
      _
    $region13: #{tpu_custom_call.1} parent=1 // pred_fallthru
      _
    // Predicated region
    $region14: #{tpu_custom_call.1} parent=1 // pred_check
      _
    $region15: #{tpu_custom_call.1} parent=1 // pred_check_branch
      %32 = sbr.rel (0) target = $region17
    $region16: #{tpu_custom_call.1} parent=1 // pred_region
      _
    $region17: #{tpu_custom_call.1} parent=1 // pred_fallthru
      _
    // Predicated region
    $region18: #{tpu_custom_call.1} parent=1 // pred_check
      _
    $region19: #{tpu_custom_call.1} parent=1 // pred_check_branch
      %34 = sbr.rel (0) target = $region21
    $region20: #{tpu_custom_call.1} parent=1 // pred_region
      %s36 = ssub.s32 1024, 1024
      %37 = vsyncadd [#allocation6], %s36
      %s38 = sshll.u32 [#allocation5], 4
      %s39 = int_to_ptr.vmem [resolvable:$true] %s38
      %44 = dma.hbm_to_vmem [thread:$0]  %s4, 1024, %s39, [#allocation6], 64, 64, 4
    $region21: #{tpu_custom_call.1} parent=1 // pred_fallthru
      _
    // Predicated region
    $region22: #{tpu_custom_call.1} parent=1 // pred_check
      _
    $region23: #{tpu_custom_call.1} parent=1 // pred_check_branch
      %46 = sbr.rel (0) target = $region25
    $region24: #{tpu_custom_call.1} parent=1 // pred_region
      _
    $region25: #{tpu_custom_call.1} parent=1 // pred_fallthru
      _
    // Predicated region
    $region26: #{tpu_custom_call.1} parent=1 // pred_check
      _
    $region27: #{tpu_custom_call.1} parent=1 // pred_check_branch
      %48 = sbr.rel (0) target = $region29
    $region28: #{tpu_custom_call.1} parent=1 // pred_region
      _
    $region29: #{tpu_custom_call.1} parent=1 // pred_fallthru
      _
    // Predicated region
    $region30: #{tpu_custom_call.1} parent=1 // pred_check
      _
    $region31: #{tpu_custom_call.1} parent=1 // pred_check_branch
      %50 = sbr.rel (0) target = $region33
    $region32: #{tpu_custom_call.1} parent=1 // pred_region
      %51 = dma.done [#allocation3], 1536
    $region33: #{tpu_custom_call.1} parent=1 // pred_fallthru
      _
    // Predicated region
    $region34: #{tpu_custom_call.1} parent=1 // pred_check
      _
    $region35: #{tpu_custom_call.1} parent=1 // pred_check_branch
      %53 = sbr.rel (0) target = $region37
    $region36: #{tpu_custom_call.1} parent=1 // pred_region
      %54 = dma.done [#allocation6], 1024
    $region37: #{tpu_custom_call.1} parent=1 // pred_fallthru
      _
    %v56 = vld [vmem:[%s0] sm:$0xf]
    %v57 = vld [vmem:[%s0 + $0x4] sm:$0xf]
    %v58 = vld [vmem:[%s0 + $0x8] sm:$0xf]
    %v59 = vld [vmem:[%s0 + $0xc] sm:$0xf]
    %v60 = vld [vmem:[%s0 + $0x10] sm:$0xf]
    %v61 = vld [vmem:[%s0 + $0x14] sm:$0xf]
    %v62 = vld [vmem:[%s0 + $0x18] sm:$0xf]
    %v63 = vld [vmem:[%s0 + $0x1c] sm:$0xf]
    %v72 = vcombine.low %v56, %v57
    %v73 = vcombine.low %v58, %v59
    %v75 = vunpack.c.l.s4 1983009808
    %v76 = vunpack.c.0.s8 %v75
    %v77 = vlaneseq
    %v78 = vshrl.u32 %v77, 7
    %v79 = vsub.s32 %v76, %v78
    %v80 = vrot.slane %v72, %v79
    %v82 = vunpack.c.l.s4 1983009808
    %v83 = vunpack.c.0.s8 %v82
    %v84 = vlaneseq
    %v85 = vshrl.u32 %v84, 7
    %v86 = vsub.s32 %v83, %v85
    %v87 = vrot.slane %v73, %v86
    %v88 = vcombine.low %v80, %v87
    %v89 = vcombine.high %v80, %v87
    %v90 = vcombine.low %v60, %v61
    %v91 = vcombine.low %v62, %v63
    %v93 = vunpack.c.l.s4 1983009808
    %v94 = vunpack.c.0.s8 %v93
    %v95 = vlaneseq
    %v96 = vshrl.u32 %v95, 7
    %v97 = vsub.s32 %v94, %v96
    %v98 = vrot.slane %v90, %v97
    %v100 = vunpack.c.l.s4 1983009808
    %v101 = vunpack.c.0.s8 %v100
    %v102 = vlaneseq
    %v103 = vshrl.u32 %v102, 7
    %v104 = vsub.s32 %v101, %v103
    %v105 = vrot.slane %v91, %v104
    %v106 = vcombine.low %v98, %v105
    %v107 = vcombine.high %v98, %v105
    %v112 = vpack.c.bf16 %v106, %v88
    %v113 = vpack.c.bf16 %v107, %v89
    %v114 = vld [vmem:[#allocation2] sm:$0xf]
    %v115 = vld [vmem:[#allocation2 + $0x4] sm:$0xf]
    %v116 = vld [vmem:[#allocation2 + $0x8] sm:$0xf]
    %v117 = vld [vmem:[#allocation2 + $0xc] sm:$0xf]
    %v118 = vld [vmem:[#allocation2 + $0x10] sm:$0xf]
    %v119 = vld [vmem:[#allocation2 + $0x14] sm:$0xf]
    %v120 = vld [vmem:[#allocation2 + $0x18] sm:$0xf]
    %v121 = vld [vmem:[#allocation2 + $0x1c] sm:$0xf]
    %v122 = vld [vmem:[#allocation2 + $0x20] sm:$0xf]
    %v123 = vld [vmem:[#allocation2 + $0x24] sm:$0xf]
    %v124 = vld [vmem:[#allocation2 + $0x28] sm:$0xf]
    %v125 = vld [vmem:[#allocation2 + $0x2c] sm:$0xf]
    %v126 = vld [vmem:[#allocation2 + $0x30] sm:$0xf]
    %v127 = vld [vmem:[#allocation2 + $0x34] sm:$0xf]
    %v128 = vld [vmem:[#allocation2 + $0x38] sm:$0xf]
    %v129 = vld [vmem:[#allocation2 + $0x3c] sm:$0xf]
    %v130 = vld [vmem:[#allocation2 + $0x40] sm:$0xf]
    %v131 = vld [vmem:[#allocation2 + $0x44] sm:$0xf]
    %v132 = vld [vmem:[#allocation2 + $0x48] sm:$0xf]
    %v133 = vld [vmem:[#allocation2 + $0x4c] sm:$0xf]
    %v134 = vld [vmem:[#allocation2 + $0x50] sm:$0xf]
    %v135 = vld [vmem:[#allocation2 + $0x54] sm:$0xf]
    %v136 = vld [vmem:[#allocation2 + $0x58] sm:$0xf]
    %v137 = vld [vmem:[#allocation2 + $0x5c] sm:$0xf]
    %v138 = vld [vmem:[%s2] sm:$0x1]
    %v140 = vlaneseq
    %v141 = vshrl.u32 %v140, 7
    %v142 = vsub.s32 0, %v141
    %v143 = vrot.slane %v138, %v142
    %v169 = vunpack.c.l.b16 %v114
    %v170 = vunpack.c.l.b16 %v115
    %v171 = vunpack.c.l.b16 %v116
    %v172 = vunpack.c.l.b16 %v117
    %v173 = vunpack.c.l.b16 %v118
    %v174 = vunpack.c.l.b16 %v119
    %v175 = vunpack.c.l.b16 %v120
    %v176 = vunpack.c.l.b16 %v121
    %v177 = vunpack.c.l.b16 %v122
    %v178 = vunpack.c.l.b16 %v123
    %v179 = vunpack.c.l.b16 %v124
    %v180 = vunpack.c.l.b16 %v125
    %v181 = vunpack.c.l.b16 %v126
    %v182 = vunpack.c.l.b16 %v127
    %v183 = vunpack.c.l.b16 %v128
    %v184 = vunpack.c.l.b16 %v129
    %v185 = vunpack.c.l.b16 %v130
    %v186 = vunpack.c.l.b16 %v131
    %v187 = vunpack.c.l.b16 %v132
    %v188 = vunpack.c.l.b16 %v133
    %v189 = vunpack.c.l.b16 %v134
    %v190 = vunpack.c.l.b16 %v135
    %v191 = vunpack.c.l.b16 %v136
    %v192 = vunpack.c.l.b16 %v137
    %v193 = vpack.c.b16 %v170, %v169
    %v194 = vpack.c.b16 %v172, %v171
    %v195 = vpack.c.b16 %v174, %v173
    %v196 = vpack.c.b16 %v176, %v175
    %v197 = vpack.c.b16 %v178, %v177
    %v198 = vpack.c.b16 %v180, %v179
    %v199 = vpack.c.b16 %v182, %v181
    %v200 = vpack.c.b16 %v184, %v183
    %v201 = vpack.c.b16 %v186, %v185
    %v202 = vpack.c.b16 %v188, %v187
    %v203 = vpack.c.b16 %v190, %v189
    %v204 = vpack.c.b16 %v192, %v191
    %vm217 = vcmask 523264
    %v219 = vsel %vm217, %v113, 0
    %221 = vmatprep.subr.bf16.mxu0 0
    %222 = vmatpush1.bf16.msra.mxu0 %v193
    %223 = vmatprep.subr.bf16.mxu0 0
    %224 = vmatpush1.bf16.msra.mxu0 %v194
    %225 = vmatprep.subr.bf16.mxu0 0
    %226 = vmatpush1.bf16.msra.mxu0 %v195
    %227 = vmatprep.subr.bf16.mxu0 0
    %228 = vmatpush1.bf16.msra.mxu0 %v196
    %229 = vmatprep.subr.bf16.mxu0 0
    %230 = vmatpush1.bf16.msra.mxu0 %v197
    %231 = vmatprep.subr.bf16.mxu0 0
    %232 = vmatpush1.bf16.msra.mxu0 %v198
    %233 = vmatprep.subr.bf16.mxu0 0
    %234 = vmatpush1.bf16.msra.mxu0 %v199
    %235 = vmatprep.subr.bf16.mxu0 0
    %236 = vmatpush1.bf16.msra.mxu0 %v200
    %237 = vmatprep.subr.bf16.mxu0 0
    %238 = vmatpush1.bf16.msra.mxu0 %v201
    %239 = vmatprep.subr.bf16.mxu0 0
    %240 = vmatpush1.bf16.msra.mxu0 %v202
    %241 = vmatprep.subr.bf16.mxu0 0
    %242 = vmatpush1.bf16.msra.mxu0 %v203
    %243 = vmatprep.subr.bf16.mxu0 0
    %244 = vmatpush1.bf16.msra.mxu0 %v204
    %245 = vmatprep.subr.bf16.mxu0 0
    %246 = vmatpush1.bf16.msra.mxu0 0
    %247 = vmatprep.subr.bf16.mxu0 0
    %248 = vmatpush1.bf16.msra.mxu0 0
    %249 = vmatprep.subr.bf16.mxu0 0
    %250 = vmatpush1.bf16.msra.mxu0 0
    %251 = vmatprep.subr.bf16.mxu0 0
    %252 = vmatpush1.bf16.msra.mxu0 0
    %253 = vmatprep.mubr.bf16.mxu0 %v219
    %254 = vmatmul.mubr.bf16.gmra.mrb[0].mxu0 %v112
    %v255 = vpop.f32.mrb[0].mxu0
    %v256 = vadd.f32 %v143, %v255
    %v257 = vpop.f32.mrb[0].mxu0
    %v258 = vpop.f32.mrb[0].mxu0
    %v259 = vadd.f32 %v143, %v258
    %v260 = vpop.f32.mrb[0].mxu0
    %261 = vdwg.mxu0
    %v262 = vmax.f32 %v256, 0.0
    %v263 = vmax.f32 %v259, 0.0
    %v264 = vpack.c.bf16 %v263, %v262
    %v265 = vld [vmem:[%s3] sm:$0xf]
    %v266 = vld [vmem:[%s3 + $0x4] sm:$0xf]
    %v267 = vld [vmem:[%s3 + $0x8] sm:$0xf]
    %v268 = vld [vmem:[%s3 + $0xc] sm:$0xf]
    %v269 = vld [vmem:[%s3 + $0x10] sm:$0xf]
    %v270 = vld [vmem:[%s3 + $0x14] sm:$0xf]
    %v271 = vld [vmem:[%s3 + $0x18] sm:$0xf]
    %v272 = vld [vmem:[%s3 + $0x1c] sm:$0xf]
    %v273 = vld [vmem:[%s3 + $0x20] sm:$0xf]
    %v274 = vld [vmem:[%s3 + $0x24] sm:$0xf]
    %v275 = vld [vmem:[%s3 + $0x28] sm:$0xf]
    %v276 = vld [vmem:[%s3 + $0x2c] sm:$0xf]
    %v277 = vld [vmem:[%s3 + $0x30] sm:$0xf]
    %v278 = vld [vmem:[%s3 + $0x34] sm:$0xf]
    %v279 = vld [vmem:[%s3 + $0x38] sm:$0xf]
    %v280 = vld [vmem:[%s3 + $0x3c] sm:$0xf]
    %v297 = vunpack.c.l.b16 %v265
    %v298 = vunpack.c.l.b16 %v266
    %v299 = vunpack.c.l.b16 %v267
    %v300 = vunpack.c.l.b16 %v268
    %v301 = vunpack.c.l.b16 %v269
    %v302 = vunpack.c.l.b16 %v270
    %v303 = vunpack.c.l.b16 %v271
    %v304 = vunpack.c.l.b16 %v272
    %v305 = vunpack.c.l.b16 %v273
    %v306 = vunpack.c.l.b16 %v274
    %v307 = vunpack.c.l.b16 %v275
    %v308 = vunpack.c.l.b16 %v276
    %v309 = vunpack.c.l.b16 %v277
    %v310 = vunpack.c.l.b16 %v278
    %v311 = vunpack.c.l.b16 %v279
    %v312 = vunpack.c.l.b16 %v280
    %v313 = vpack.c.b16 %v298, %v297
    %v314 = vpack.c.b16 %v300, %v299
    %v315 = vpack.c.b16 %v302, %v301
    %v316 = vpack.c.b16 %v304, %v303
    %v317 = vpack.c.b16 %v306, %v305
    %v318 = vpack.c.b16 %v308, %v307
    %v319 = vpack.c.b16 %v310, %v309
    %v320 = vpack.c.b16 %v312, %v311
    %329 = vmatprep.subr.bf16.mxu0 0
    %330 = vmatpush1.bf16.msra.mxu0 %v313
    %331 = vmatprep.subr.bf16.mxu0 0
    %332 = vmatpush1.bf16.msra.mxu0 %v314
    %333 = vmatprep.subr.bf16.mxu0 0
    %334 = vmatpush1.bf16.msra.mxu0 %v315
    %335 = vmatprep.subr.bf16.mxu0 0
    %336 = vmatpush1.bf16.msra.mxu0 %v316
    %337 = vmatprep.subr.bf16.mxu0 0
    %338 = vmatpush1.bf16.msra.mxu0 %v317
    %339 = vmatprep.subr.bf16.mxu0 0
    %340 = vmatpush1.bf16.msra.mxu0 %v318
    %341 = vmatprep.subr.bf16.mxu0 0
    %342 = vmatpush1.bf16.msra.mxu0 %v319
    %343 = vmatprep.subr.bf16.mxu0 0
    %344 = vmatpush1.bf16.msra.mxu0 %v320
    %345 = vmatprep.subr.bf16.mxu0 0
    %346 = vmatpush1.bf16.msra.mxu0 0
    %347 = vmatprep.subr.bf16.mxu0 0
    %348 = vmatpush1.bf16.msra.mxu0 0
    %349 = vmatprep.subr.bf16.mxu0 0
    %350 = vmatpush1.bf16.msra.mxu0 0
    %351 = vmatprep.subr.bf16.mxu0 0
    %352 = vmatpush1.bf16.msra.mxu0 0
    %353 = vmatprep.subr.bf16.mxu0 0
    %354 = vmatpush1.bf16.msra.mxu0 0
    %355 = vmatprep.subr.bf16.mxu0 0
    %356 = vmatpush1.bf16.msra.mxu0 0
    %357 = vmatprep.subr.bf16.mxu0 0
    %358 = vmatpush1.bf16.msra.mxu0 0
    %359 = vmatprep.subr.bf16.mxu0 0
    %360 = vmatpush1.bf16.msra.mxu0 0
    %361 = vmatprep.mubr.bf16.mxu0 0
    %362 = vmatmul.mubr.bf16.gmra.mrb[0].mxu0 %v264
    %v363 = vpop.f32.mrb[0].mxu0
    %v364 = vadd.f32 0.0, %v363
    %v365 = vpop.f32.mrb[0].mxu0
    %v366 = vpop.f32.mrb[0].mxu0
    %v367 = vadd.f32 0.0, %v366
    %v368 = vpop.f32.mrb[0].mxu0
    %369 = vdwg.mxu0
    %v370 = vmax.f32 %v364, 0.0
    %v371 = vmax.f32 %v367, 0.0
    %v372 = vpack.c.bf16 %v371, %v370
    %v373 = vld [vmem:[#allocation5] sm:$0xf]
    %v374 = vld [vmem:[#allocation5 + $0x4] sm:$0xf]
    %v375 = vld [vmem:[#allocation5 + $0x8] sm:$0xf]
    %v376 = vld [vmem:[#allocation5 + $0xc] sm:$0xf]
    %v377 = vld [vmem:[#allocation5 + $0x10] sm:$0xf]
    %v378 = vld [vmem:[#allocation5 + $0x14] sm:$0xf]
    %v379 = vld [vmem:[#allocation5 + $0x18] sm:$0xf]
    %v380 = vld [vmem:[#allocation5 + $0x1c] sm:$0xf]
    %v381 = vld [vmem:[#allocation5 + $0x20] sm:$0xf]
    %v382 = vld [vmem:[#allocation5 + $0x24] sm:$0xf]
    %v383 = vld [vmem:[#allocation5 + $0x28] sm:$0xf]
    %v384 = vld [vmem:[#allocation5 + $0x2c] sm:$0xf]
    %v385 = vld [vmem:[#allocation5 + $0x30] sm:$0xf]
    %v386 = vld [vmem:[#allocation5 + $0x34] sm:$0xf]
    %v387 = vld [vmem:[#allocation5 + $0x38] sm:$0xf]
    %v388 = vld [vmem:[#allocation5 + $0x3c] sm:$0xf]
    %v389 = vld [vmem:[%s5] sm:$0x1]
    %v391 = vlaneseq
    %v392 = vshrl.u32 %v391, 7
    %v393 = vsub.s32 0, %v392
    %v394 = vrot.slane %v389, %v393
    %v412 = vunpack.c.l.b16 %v373
    %v413 = vunpack.c.l.b16 %v374
    %v414 = vunpack.c.l.b16 %v375
    %v415 = vunpack.c.l.b16 %v376
    %v416 = vunpack.c.l.b16 %v377
    %v417 = vunpack.c.l.b16 %v378
    %v418 = vunpack.c.l.b16 %v379
    %v419 = vunpack.c.l.b16 %v380
    %v420 = vunpack.c.l.b16 %v381
    %v421 = vunpack.c.l.b16 %v382
    %v422 = vunpack.c.l.b16 %v383
    %v423 = vunpack.c.l.b16 %v384
    %v424 = vunpack.c.l.b16 %v385
    %v425 = vunpack.c.l.b16 %v386
    %v426 = vunpack.c.l.b16 %v387
    %v427 = vunpack.c.l.b16 %v388
    %v428 = vpack.c.b16 %v413, %v412
    %v429 = vpack.c.b16 %v415, %v414
    %v430 = vpack.c.b16 %v417, %v416
    %v431 = vpack.c.b16 %v419, %v418
    %v432 = vpack.c.b16 %v421, %v420
    %v433 = vpack.c.b16 %v423, %v422
    %v434 = vpack.c.b16 %v425, %v424
    %v435 = vpack.c.b16 %v427, %v426
    %444 = vmatprep.subr.bf16.mxu0 0
    %445 = vmatpush1.bf16.msra.mxu0 %v428
    %446 = vmatprep.subr.bf16.mxu0 0
    %447 = vmatpush1.bf16.msra.mxu0 %v429
    %448 = vmatprep.subr.bf16.mxu0 0
    %449 = vmatpush1.bf16.msra.mxu0 %v430
    %450 = vmatprep.subr.bf16.mxu0 0
    %451 = vmatpush1.bf16.msra.mxu0 %v431
    %452 = vmatprep.subr.bf16.mxu0 0
    %453 = vmatpush1.bf16.msra.mxu0 %v432
    %454 = vmatprep.subr.bf16.mxu0 0
    %455 = vmatpush1.bf16.msra.mxu0 %v433
    %456 = vmatprep.subr.bf16.mxu0 0
    %457 = vmatpush1.bf16.msra.mxu0 %v434
    %458 = vmatprep.subr.bf16.mxu0 0
    %459 = vmatpush1.bf16.msra.mxu0 %v435
    %460 = vmatprep.subr.bf16.mxu0 0
    %461 = vmatpush1.bf16.msra.mxu0 0
    %462 = vmatprep.subr.bf16.mxu0 0
    %463 = vmatpush1.bf16.msra.mxu0 0
    %464 = vmatprep.subr.bf16.mxu0 0
    %465 = vmatpush1.bf16.msra.mxu0 0
    %466 = vmatprep.subr.bf16.mxu0 0
    %467 = vmatpush1.bf16.msra.mxu0 0
    %468 = vmatprep.subr.bf16.mxu0 0
    %469 = vmatpush1.bf16.msra.mxu0 0
    %470 = vmatprep.subr.bf16.mxu0 0
    %471 = vmatpush1.bf16.msra.mxu0 0
    %472 = vmatprep.subr.bf16.mxu0 0
    %473 = vmatpush1.bf16.msra.mxu0 0
    %474 = vmatprep.subr.bf16.mxu0 0
    %475 = vmatpush1.bf16.msra.mxu0 0
    %476 = vmatprep.mubr.bf16.mxu0 0
    %477 = vmatmul.mubr.bf16.gmra.mrb[0].mxu0 %v372
    %v478 = vpop.f32.mrb[0].mxu0
    %v479 = vadd.f32 %v394, %v478
    %v480 = vpop.f32.mrb[0].mxu0
    %v481 = vpop.f32.mrb[0].mxu0
    %v482 = vadd.f32 %v394, %v481
    %v483 = vpop.f32.mrb[0].mxu0
    %484 = vdwg.mxu0
    %v485 = vmax.f32 %v479, 0.0
    %v486 = vmax.f32 %v482, 0.0
    %v487 = vpack.c.bf16 %v486, %v485
    %v488 = vld [vmem:[%s6] sm:$0xf]
    %v489 = vld [vmem:[%s6 + $0x4] sm:$0xf]
    %v490 = vld [vmem:[%s6 + $0x8] sm:$0xf]
    %v491 = vld [vmem:[%s6 + $0xc] sm:$0xf]
    %v492 = vld [vmem:[%s6 + $0x10] sm:$0xf]
    %v493 = vld [vmem:[%s6 + $0x14] sm:$0xf]
    %v494 = vld [vmem:[%s6 + $0x18] sm:$0xf]
    %v495 = vld [vmem:[%s6 + $0x1c] sm:$0xf]
    %v496 = vld [vmem:[%s6 + $0x20] sm:$0xf]
    %v497 = vld [vmem:[%s6 + $0x24] sm:$0xf]
    %v498 = vld [vmem:[%s6 + $0x28] sm:$0xf]
    %v499 = vld [vmem:[%s6 + $0x2c] sm:$0xf]
    %v500 = vld [vmem:[%s6 + $0x30] sm:$0xf]
    %v501 = vld [vmem:[%s6 + $0x34] sm:$0xf]
    %v502 = vld [vmem:[%s6 + $0x38] sm:$0xf]
    %v503 = vld [vmem:[%s6 + $0x3c] sm:$0xf]
    %v520 = vunpack.c.l.b16 %v488
    %v521 = vunpack.c.l.b16 %v489
    %v522 = vunpack.c.l.b16 %v490
    %v523 = vunpack.c.l.b16 %v491
    %v524 = vunpack.c.l.b16 %v492
    %v525 = vunpack.c.l.b16 %v493
    %v526 = vunpack.c.l.b16 %v494
    %v527 = vunpack.c.l.b16 %v495
    %v528 = vunpack.c.l.b16 %v496
    %v529 = vunpack.c.l.b16 %v497
    %v530 = vunpack.c.l.b16 %v498
    %v531 = vunpack.c.l.b16 %v499
    %v532 = vunpack.c.l.b16 %v500
    %v533 = vunpack.c.l.b16 %v501
    %v534 = vunpack.c.l.b16 %v502
    %v535 = vunpack.c.l.b16 %v503
    %v536 = vpack.c.b16 %v521, %v520
    %v537 = vpack.c.b16 %v523, %v522
    %v538 = vpack.c.b16 %v525, %v524
    %v539 = vpack.c.b16 %v527, %v526
    %v540 = vpack.c.b16 %v529, %v528
    %v541 = vpack.c.b16 %v531, %v530
    %v542 = vpack.c.b16 %v533, %v532
    %v543 = vpack.c.b16 %v535, %v534
    %552 = vmatprep.subr.bf16.mxu0 0
    %553 = vmatpush1.bf16.msra.mxu0 %v536
    %554 = vmatprep.subr.bf16.mxu0 0
    %555 = vmatpush1.bf16.msra.mxu0 %v537
    %556 = vmatprep.subr.bf16.mxu0 0
    %557 = vmatpush1.bf16.msra.mxu0 %v538
    %558 = vmatprep.subr.bf16.mxu0 0
    %559 = vmatpush1.bf16.msra.mxu0 %v539
    %560 = vmatprep.subr.bf16.mxu0 0
    %561 = vmatpush1.bf16.msra.mxu0 %v540
    %562 = vmatprep.subr.bf16.mxu0 0
    %563 = vmatpush1.bf16.msra.mxu0 %v541
    %564 = vmatprep.subr.bf16.mxu0 0
    %565 = vmatpush1.bf16.msra.mxu0 %v542
    %566 = vmatprep.subr.bf16.mxu0 0
    %567 = vmatpush1.bf16.msra.mxu0 %v543
    %568 = vmatprep.subr.bf16.mxu0 0
    %569 = vmatpush1.bf16.msra.mxu0 0
    %570 = vmatprep.subr.bf16.mxu0 0
    %571 = vmatpush1.bf16.msra.mxu0 0
    %572 = vmatprep.subr.bf16.mxu0 0
    %573 = vmatpush1.bf16.msra.mxu0 0
    %574 = vmatprep.subr.bf16.mxu0 0
    %575 = vmatpush1.bf16.msra.mxu0 0
    %576 = vmatprep.subr.bf16.mxu0 0
    %577 = vmatpush1.bf16.msra.mxu0 0
    %578 = vmatprep.subr.bf16.mxu0 0
    %579 = vmatpush1.bf16.msra.mxu0 0
    %580 = vmatprep.subr.bf16.mxu0 0
    %581 = vmatpush1.bf16.msra.mxu0 0
    %582 = vmatprep.subr.bf16.mxu0 0
    %583 = vmatpush1.bf16.msra.mxu0 0
    %584 = vmatprep.mubr.bf16.mxu0 0
    %585 = vmatmul.mubr.bf16.gmra.mrb[0].mxu0 %v487
    %v586 = vpop.f32.mrb[0].mxu0
    %v587 = vadd.f32 0.0, %v586
    %v588 = vpop.f32.mrb[0].mxu0
    %v589 = vpop.f32.mrb[0].mxu0
    %v590 = vadd.f32 0.0, %v589
    %v591 = vpop.f32.mrb[0].mxu0
    %592 = vdwg.mxu0
    %v593 = vpack.c.bf16 %v590, %v587
    %v595 = vcombine.high %v593, %v593
    %v597 = vunpack.c.l.s4 1966171168
    %v598 = vunpack.c.0.s8 %v597
    %v599 = vlaneseq
    %v600 = vshrl.u32 %v599, 7
    %v601 = vsub.s32 %v598, %v600
    %v602 = vrot.slane %v593, %v601
    %v604 = vunpack.c.l.s4 1966171168
    %v605 = vunpack.c.0.s8 %v604
    %v606 = vlaneseq
    %v607 = vshrl.u32 %v606, 7
    %v608 = vsub.s32 %v605, %v607
    %v609 = vrot.slane %v595, %v608
    %v610 = vcombine.high %v602, %v602
    %v611 = vcombine.high %v609, %v609
    %v613 = vunpack.c.l.s4 1966171168
    %v614 = vunpack.c.0.s8 %v613
    %v615 = vlaneseq
    %v616 = vshrl.u32 %v615, 7
    %v617 = vsub.s32 %v614, %v616
    %v618 = vrot.slane %v602, %v617
    %v620 = vunpack.c.l.s4 1966171168
    %v621 = vunpack.c.0.s8 %v620
    %v622 = vlaneseq
    %v623 = vshrl.u32 %v622, 7
    %v624 = vsub.s32 %v621, %v623
    %v625 = vrot.slane %v609, %v624
    %v627 = vunpack.c.l.s4 1966171168
    %v628 = vunpack.c.0.s8 %v627
    %v629 = vlaneseq
    %v630 = vshrl.u32 %v629, 7
    %v631 = vsub.s32 %v628, %v630
    %v632 = vrot.slane %v610, %v631
    %v634 = vunpack.c.l.s4 1966171168
    %v635 = vunpack.c.0.s8 %v634
    %v636 = vlaneseq
    %v637 = vshrl.u32 %v636, 7
    %v638 = vsub.s32 %v635, %v637
    %v639 = vrot.slane %v611, %v638
    %v640 = vcombine.high %v618, %v618
    %v641 = vcombine.high %v625, %v625
    %v642 = vcombine.high %v632, %v632
    %v643 = vcombine.high %v639, %v639
    %vm652 = vcmask 57344
    %653 = vst.msk [vmem:[#allocation7] sm:$0x1] %vm652, %v618
    %654 = vst.msk [vmem:[#allocation7 + $0x1] sm:$0x1] %vm652, %v632
    %655 = vst.msk [vmem:[#allocation7 + $0x2] sm:$0x1] %vm652, %v640
    %656 = vst.msk [vmem:[#allocation7 + $0x3] sm:$0x1] %vm652, %v642
    %657 = vst.msk [vmem:[#allocation7 + $0x4] sm:$0x1] %vm652, %v625
    %658 = vst.msk [vmem:[#allocation7 + $0x5] sm:$0x1] %vm652, %v639
    %659 = vst.msk [vmem:[#allocation7 + $0x6] sm:$0x1] %vm652, %v641
    %660 = vst.msk [vmem:[#allocation7 + $0x7] sm:$0x1] %vm652, %v643
    // Predicated region
    $region38: #{tpu_custom_call.1} parent=1 // pred_check
      _
    $region39: #{tpu_custom_call.1} parent=1 // pred_check_branch
      %662 = sbr.rel (0) target = $region41
    $region40: #{tpu_custom_call.1} parent=1 // pred_region
      %s664 = ssub.s32 128, 16
      %665 = vsyncadd [#allocation4], %s664
      %s666 = sshll.u32 [#allocation7], 4
      %s667 = int_to_ptr.vmem [resolvable:$true] %s666
      %672 = dma.vmem_to_hbm [thread:$0]  %s667, 16, %s7, [#allocation4], 16, 16, 1
    $region41: #{tpu_custom_call.1} parent=1 // pred_fallthru
      _
    // Predicated region
    $region42: #{tpu_custom_call.1} parent=1 // pred_check
      _
    $region43: #{tpu_custom_call.1} parent=1 // pred_check_branch
      %674 = sbr.rel (0) target = $region45
    $region44: #{tpu_custom_call.1} parent=1 // pred_region
      %675 = dma.done [#allocation4], 128
    $region45: #{tpu_custom_call.1} parent=1 // pred_fallthru
      _
    %676 = vsyncpa [#allocation3], 1
    %677 = vsyncpa [#allocation6], 1
    %678 = vsyncpa [#allocation4], 1

</llo_original>
